<compile_context>
chip_gen: v5e
topology: v5e:2x2
jax: 0.10.0
libtpu: 0.0.40
codegen_flags: <defaults>
</compile_context>

<pallas_src>
import jax
import jax.numpy as jnp
from jax import lax
from jax.experimental import pallas as pl
from jax.experimental.pallas import tpu as pltpu


def _choose_tm(n, c, itemsize, budget_bytes=8 << 20):
    """Rows per tile so a double-buffered (TM, C) logits tile fits the budget."""
    max_rows = budget_bytes // (2 * max(c, 1) * itemsize)
    max_rows = max(8, (max_rows // 8) * 8)
    tm = min(n, 1024, max_rows)
    if tm < n:
        tm = max(8, (tm // 8) * 8)
    return tm


def _make_ce_kernel(n_total, tm):
    def kernel(logits_ref, labels_ref, out_ref):
        # logits_ref: (TM, C) native dtype in VMEM
        # labels_ref: (TM, 1) int32 in VMEM
        # out_ref:    (1, 8, 128) f32 — this block's partial loss sum (broadcast)
        x = logits_ref[...].astype(jnp.float32)          # (TM, C) f32
        labels = labels_ref[...]                         # (TM, 1) i32
        c = x.shape[-1]

        # Numerically stable logsumexp along the class axis (EUP exp/log).
        m = jnp.max(x, axis=-1, keepdims=True)                              # (TM, 1)
        lse = m + jnp.log(jnp.sum(jnp.exp(x - m), axis=-1, keepdims=True))  # (TM, 1)

        # Target logit via select + row reduce (no materialized f32 onehot).
        class_ids = lax.broadcasted_iota(jnp.int32, (tm, c), 1)             # (TM, C)
        target = jnp.sum(jnp.where(class_ids == labels, x, 0.0),
                         axis=-1, keepdims=True)                            # (TM, 1)

        # Mask rows past the global batch size (tail block when N % TM != 0).
        row_ids = lax.broadcasted_iota(jnp.int32, (tm, 1), 0) + pl.program_id(0) * tm
        valid = row_ids < n_total
        per_row = jnp.where(valid, lse - target, 0.0)                       # (TM, 1)

        partial = jnp.sum(per_row)
        # Lane-dense, full-vreg store of this block's partial sum.
        out_ref[...] = jnp.full(out_ref.shape, partial, dtype=jnp.float32)

    return kernel


def cross_entropy_loss(y_pred, y_true):
    """Mean cross-entropy over logits y_pred (N, C) and int labels y_true (N,)."""
    n, c = y_pred.shape
    labels_2d = y_true.astype(jnp.int32).reshape(n, 1)

    itemsize = jnp.dtype(y_pred.dtype).itemsize
    tm = _choose_tm(n, c, itemsize)
    num_blocks = pl.cdiv(n, tm)

    # Explicit VMEM budget: 2 inputs x 2 pipeline buffers x tile + output tile.
    needed = 4 * (tm * c * itemsize + tm * 4) + 2 * 8 * 128 * 4 + (1 << 16)
    vmem_limit = int(min(64 << 20, max(16 << 20, 2 * needed)))

    kernel = _make_ce_kernel(n, tm)

    partials = pl.pallas_call(
        kernel,
        out_shape=jax.ShapeDtypeStruct((num_blocks, 8, 128), jnp.float32),
        grid_spec=pltpu.PrefetchScalarGridSpec(
            num_scalar_prefetch=0,
            grid=(num_blocks,),
            in_specs=[
                pl.BlockSpec((tm, c), lambda i: (i, 0)),   # logits row-block
                pl.BlockSpec((tm, 1), lambda i: (i, 0)),   # labels row-block
            ],
            out_specs=pl.BlockSpec((1, 8, 128), lambda i: (i, 0, 0)),
        ),
        compiler_params=pltpu.CompilerParams(
            dimension_semantics=("parallel",),
            vmem_limit_bytes=vmem_limit,
        ),
        cost_estimate=pl.CostEstimate(
            flops=5 * n * c,
            transcendentals=n * c,
            bytes_accessed=n * c * itemsize + n * 4 + num_blocks * 8 * 128 * 4,
        ),
    )(y_pred, labels_2d)  # native dtype in; cast to f32 inside the kernel

    # Tiny final reduce + global mean outside the kernel.
    return jnp.sum(partials[:, 0, 0]) / jnp.float32(n)


def _reference_cross_entropy(y_pred, y_true):
    logp = jax.nn.log_softmax(y_pred.astype(jnp.float32), axis=-1)
    nll = -jnp.take_along_axis(logp, y_true[:, None].astype(jnp.int32), axis=-1)
    return jnp.mean(nll)


if __name__ == "__main__":
    key = jax.random.PRNGKey(0)
    k1, k2 = jax.random.split(key)

    n, c = 8, 32  # small shapes: batch=8, num_classes=32
    y_pred = jax.random.normal(k1, (n, c), dtype=jnp.float32)
    y_true = jax.random.randint(k2, (n,), 0, c, dtype=jnp.int32)

    loss = cross_entropy_loss(y_pred, y_true)
    jax.block_until_ready(loss)

    ref = _reference_cross_entropy(y_pred, y_true)
    assert jnp.allclose(loss, ref, atol=1e-5, rtol=1e-5), (loss, ref)

    print("KERNEL_OK")
</pallas_src>

<mosaic_0001>
module attributes {stable_mosaic.version = 11 : i64} {
  func.func @kernel(%arg0: i32, %arg1: memref<8x32xf32, #tpu.memory_space<vmem>>, %arg2: memref<8x1xi32, #tpu.memory_space<vmem>>, %arg3: memref<1x8x128xf32, #tpu.memory_space<vmem>>) attributes {dimension_semantics = [#tpu.dimension_semantics<parallel>], iteration_bounds = array<i64: 1>, scalar_prefetch = 0 : i64, scratch_operands = 0 : i64, tpu.core_type = #tpu.core_type<tc>, window_params = [{transform_indices = @transform_0, window_bounds = array<i64: 8, 32>}, {transform_indices = @transform_1, window_bounds = array<i64: 8, 1>}, {transform_indices = @transform_2, window_bounds = array<i64: 1, 8, 128>}]} {
    %c0 = arith.constant 0 : index
    %c0_0 = arith.constant 0 : index
    %0 = vector.load %arg1[%c0, %c0_0] : memref<8x32xf32, #tpu.memory_space<vmem>>, vector<8x32xf32>
    %c0_1 = arith.constant 0 : index
    %c0_2 = arith.constant 0 : index
    %1 = vector.load %arg2[%c0_1, %c0_2] : memref<8x1xi32, #tpu.memory_space<vmem>>, vector<8x1xi32>
    %cst = arith.constant dense<0xFF800000> : vector<8xf32>
    %2 = vector.multi_reduction <maximumf>, %0, %cst [1] : vector<8x32xf32> to vector<8xf32>
    %3 = vector.shape_cast %2 : vector<8xf32> to vector<8x1xf32>
    %4 = vector.broadcast %3 : vector<8x1xf32> to vector<8x32xf32>
    %5 = arith.subf %0, %4 : vector<8x32xf32>
    %6 = math.exp %5 : vector<8x32xf32>
    %cst_3 = arith.constant dense<0.000000e+00> : vector<8xf32>
    %7 = vector.multi_reduction <add>, %6, %cst_3 [1] : vector<8x32xf32> to vector<8xf32>
    %8 = vector.shape_cast %7 : vector<8xf32> to vector<8x1xf32>
    %9 = math.log %8 : vector<8x1xf32>
    %10 = arith.addf %3, %9 : vector<8x1xf32>
    %11 = tpu.iota {dimensions = array<i32: 1>} : vector<8x32xi32>
    %12 = vector.broadcast %1 : vector<8x1xi32> to vector<8x32xi32>
    %13 = arith.cmpi eq, %11, %12 : vector<8x32xi32>
    %cst_4 = arith.constant 0.000000e+00 : f32
    %14 = vector.broadcast %cst_4 : f32 to vector<8x32xf32>
    %15 = arith.select %13, %0, %14 : vector<8x32xi1>, vector<8x32xf32>
    %cst_5 = arith.constant dense<0.000000e+00> : vector<8xf32>
    %16 = vector.multi_reduction <add>, %15, %cst_5 [1] : vector<8x32xf32> to vector<8xf32>
    %17 = vector.shape_cast %16 : vector<8xf32> to vector<8x1xf32>
    %18 = tpu.iota {dimensions = array<i32: 0>} : vector<8x1xi32>
    %c8_i32 = arith.constant 8 : i32
    %19 = arith.muli %arg0, %c8_i32 : i32
    %20 = vector.broadcast %19 : i32 to vector<8x1xi32>
    %21 = arith.addi %18, %20 : vector<8x1xi32>
    %c8_i32_6 = arith.constant 8 : i32
    %22 = vector.broadcast %c8_i32_6 : i32 to vector<8x1xi32>
    %23 = arith.cmpi slt, %21, %22 : vector<8x1xi32>
    %24 = arith.subf %10, %17 : vector<8x1xf32>
    %cst_7 = arith.constant 0.000000e+00 : f32
    %25 = vector.broadcast %cst_7 : f32 to vector<8x1xf32>
    %26 = arith.select %23, %24, %25 : vector<8x1xi1>, vector<8x1xf32>
    %27 = vector.shape_cast %26 : vector<8x1xf32> to vector<1x8x1xf32>
    %cst_8 = arith.constant dense<0.000000e+00> : vector<1xf32>
    %28 = vector.multi_reduction <add>, %27, %cst_8 [1, 2] : vector<1x8x1xf32> to vector<1xf32>
    %29 = vector.shape_cast %28 : vector<1xf32> to vector<1x1x1xf32>
    %30 = vector.extract %29[0, 0, 0] : f32 from vector<1x1x1xf32>
    %31 = vector.broadcast %30 : f32 to vector<1x8x128xf32>
    %c0_9 = arith.constant 0 : index
    %c0_10 = arith.constant 0 : index
    %c0_11 = arith.constant 0 : index
    %32 = vector.load %arg3[%c0_9, %c0_10, %c0_11] : memref<1x8x128xf32, #tpu.memory_space<vmem>>, vector<1x8x128xf32>
    tpu.vector_store %arg3[%c0_9, %c0_10, %c0_11], %31 {strides = array<i32>} : memref<1x8x128xf32, #tpu.memory_space<vmem>>, vector<1x8x128xf32>,
    return
  }
  func.func @transform_0(%arg0: i32) -> (i32, i32) {
    %c0_i32 = arith.constant 0 : i32
    %c0_i32_0 = arith.constant 0 : i32
    return %arg0, %c0_i32 : i32, i32
  }
  func.func @transform_1(%arg0: i32) -> (i32, i32) {
    %c0_i32 = arith.constant 0 : i32
    %c0_i32_0 = arith.constant 0 : i32
    return %arg0, %c0_i32 : i32, i32
  }
  func.func @transform_2(%arg0: i32) -> (i32, i32, i32) {
    %c0_i32 = arith.constant 0 : i32
    %c0_i32_0 = arith.constant 0 : i32
    %c0_i32_1 = arith.constant 0 : i32
    return %arg0, %c0_i32, %c0_i32_0 : i32, i32, i32
  }
}

</mosaic_0001>

<llo_original>
// kernel: tpu_custom_call.1
$region0: #{tpu_custom_call.1}
  #allocation0 [shape = 'u32[]', space=smem, size = 0x4, offset = 0x4, fixed_abs, tag = 'smem constant byte address 0x4 - core index']
  #allocation1 [shape = 'u32[72,128]{1,0:T(1,128)}', space=vmem, size = 0x9000, scoped, tag = 'internal scratch']
  %s0 = inlined_call_operand.vmem [shape: f32[8,32], index: 0, kind: input, shape index: {}]
  %s1 = inlined_call_operand.vmem [shape: s32[8,1], index: 1, kind: input, shape index: {}]
  %s2 = inlined_call_operand.hbm [shape: f32[1,8,128], index: 2, kind: output, shape index: {}]
  %s3 = sld [smem:[#allocation0]]
  $region18: #{tpu_custom_call.1} parent=0
    _
  %s5 = ssub.s32 1, %s3
  %s6 = scalar_select 0, %s5, %s3
  $region1: #{tpu_custom_call.1} parent=0
    #allocation2 [shape = 'u8[4096]{0}', space=vmem, size = 0x1000, scoped, tag = 'output window, operand 0, single buffered']
    #allocation3 [shape = 's32[1]{0}', space=sflag, size = 0x4, scoped, tag = 'scoped memory for tpu_custom_call.1']
    %7 = vsyncpa [#allocation3], 0
    // Predicated region
    $region2: #{tpu_custom_call.1} parent=1 // pred_check
      _
    $region3: #{tpu_custom_call.1} parent=1 // pred_check_branch
      %9 = sbr.rel (0) target = $region5
    $region4: #{tpu_custom_call.1} parent=1 // pred_region
      _
    $region5: #{tpu_custom_call.1} parent=1 // pred_fallthru
      _
    // Predicated region
    $region6: #{tpu_custom_call.1} parent=1 // pred_check
      _
    $region7: #{tpu_custom_call.1} parent=1 // pred_check_branch
      %11 = sbr.rel (0) target = $region9
    $region8: #{tpu_custom_call.1} parent=1 // pred_region
      _
    $region9: #{tpu_custom_call.1} parent=1 // pred_fallthru
      _
    %v12 = vld [vmem:[%s0] sm:$0xff]
    %v13 = vld [vmem:[%s1] sm:$0xff]
    %vm14 = vcmask 261120
    %v15 = vsel %vm14, %v12, -inf
    %16 = vmax.xlane.f32.xlu0 %v15
    %v17 = vpop.xlane.xlu0 %16
    %v18 = vsub.f32 %v12, %v17
    %v19 = vmul.f32 %v18, 1.442695
    %v20 = vpow.pop %v19
    %v21 = vsel %vm14, %v20, 0.0
    %22 = vadd.xlane.f32.xlu0 %v21
    %v23 = vpop.xlane.xlu0 %22
    %v24 = vlog2.pop %v23
    %v25 = vmul.f32 %v24, 0.6931472
    %v26 = vadd.f32 %v17, %v25
    %v27 = vlaneseq
    %v28 = vand.u32 %v27, 127
    %29 = vset.pattern.permute.xlu0 0
    %30 = vperm.xlu0 %29, %v13
    %v31 = vpop.permute.xlu0 %30
    %vm32 = vcmp.eq.s32.totalorder %v28, %v31
    %v33 = vsel %vm32, %v12, 0.0
    %v34 = vsel %vm14, %v33, 0.0
    %35 = vadd.xlane.f32.xlu0 %v34
    %v36 = vpop.xlane.xlu0 %35
    %v37 = vlaneseq
    %v38 = vshrl.u32 %v37, 7
    %s39 = smul.u32 0, 8
    %v40 = vstv %s39
    %v41 = vadd.s32 %v38, %v40
    %vm42 = vcmp.lt.s32.totalorder %v41, 8
    %v43 = vsub.f32 %v26, %v36
    %v44 = vsel %vm42, %v43, 0.0
    %vm45 = vcmask 7168
    %v46 = vsel %vm45, %v44, 0.0
    %47 = vadd.xlane.f32.xlu0 %v46
    %v48 = vpop.xlane.xlu0 %47
    %v49 = vrot.slane %v48, 4
    %v50 = vadd.f32 %v48, %v49
    %v51 = vrot.slane %v50, 2
    %v52 = vadd.f32 %v50, %v51
    %v53 = vrot.slane %v52, 1
    %v54 = vadd.f32 %v52, %v53
    %s55 = vtos %v54
    %v56 = vstv %s55
    %57 = vst [vmem:[#allocation2] sm:$0xff] %v56
    // Predicated region
    $region10: #{tpu_custom_call.1} parent=1 // pred_check
      _
    $region11: #{tpu_custom_call.1} parent=1 // pred_check_branch
      %59 = sbr.rel (0) target = $region13
    $region12: #{tpu_custom_call.1} parent=1 // pred_region
      %61 = vsyncadd [#allocation3], 0
      %s63 = sshll.u32 [#allocation2], 4
      %s64 = int_to_ptr.vmem [resolvable:$true] %s63
      %s65 = sshll.u32 %s2, 4
      %s66 = int_to_ptr.hbm [resolvable:$true] %s65
      %68 = dma.vmem_to_hbm [thread:$0]  %s64, 128, %s66, [#allocation3]
    $region13: #{tpu_custom_call.1} parent=1 // pred_fallthru
      _
    // Predicated region
    $region14: #{tpu_custom_call.1} parent=1 // pred_check
      _
    $region15: #{tpu_custom_call.1} parent=1 // pred_check_branch
      %70 = sbr.rel (0) target = $region17
    $region16: #{tpu_custom_call.1} parent=1 // pred_region
      %72 = dma.done [#allocation3], 128
    $region17: #{tpu_custom_call.1} parent=1 // pred_fallthru
      _
    %73 = vsyncpa [#allocation3], 1

</llo_original>
